<compile_context>
chip_gen: v5e
topology: v5e:2x2
jax: 0.10.0
libtpu: 0.0.40
codegen_flags: <defaults>
</compile_context>

<pallas_src>
import functools

import jax
import jax.numpy as jnp
from jax.experimental import pallas as pl
from jax.experimental.pallas import tpu as pltpu


def _cnncell_kernel(xg_ref, w_ref, b_ref, o_ref, *, Wp, row_blocks, nb):
    # xg_ref : (nb, Cin, (H+2)*Wp + 2)  zero-padded, flattened images (operand dtype)
    # w_ref  : (Cout, 9*Cin)            weights, columns ordered (ky, kx, ci)
    # b_ref  : (Cout, 1)                bias (f32)
    # o_ref  : (nb, Cout, Ht*Wp)        lane-dense output slab for this row block
    cin = xg_ref.shape[1]
    span = o_ref.shape[2]                      # Ht * Wp (lane dim)

    if row_blocks == 1:
        base = 0                               # purely static tap slices
    else:
        base = pl.program_id(1) * span
        if span % 128 == 0:
            base = pl.multiple_of(base, 128)   # lane-aligned dynamic tap slices

    for b in range(nb):                        # static (unrolled) batch fold
        acc = None
        for ky in range(3):
            for kx in range(3):
                t = ky * 3 + kx
                # Constant lane offset per tap; operands stay in bf16 (or the
                # native narrow dtype), accumulation is forced to f32 on the MXU.
                tap = xg_ref[b, :, pl.ds(base + ky * Wp + kx, span)]
                part = jnp.dot(w_ref[:, t * cin:(t + 1) * cin], tap,
                               preferred_element_type=jnp.float32)
                acc = part if acc is None else acc + part
        acc = jnp.maximum(acc + b_ref[...], 0.0)     # f32 epilogue: bias + ReLU
        o_ref[b, :, :] = acc.astype(o_ref.dtype)


def _default_vmem_budget():
    """Generation-aware VMEM budget with headroom for compiler scratch."""
    cap = 128 * 1024 * 1024
    try:
        cap = int(pltpu.get_tpu_info().vmem_capacity_bytes)
    except Exception:
        pass
    # ~96 MiB on 128 MiB parts (v5e/v6e), ~48 MiB on the 64 MiB v7x.
    return max(32 * 1024 * 1024, min(cap * 3 // 4, cap - 16 * 1024 * 1024))


def _divisors(n):
    return [d for d in range(1, n + 1) if n % d == 0]


def _pick_tiling(N, H, Wp, Cin, Cout, op_isize, out_isize, budget):
    """Pick (row-block height Ht, row_blocks, batch fold nb) against a VMEM budget."""
    Lg = (H + 2) * Wp + 2

    def fp(ht, nb):
        span = ht * Wp
        return (2 * nb * Cin * Lg * op_isize          # resident input (2 buffers)
                + 2 * nb * Cout * span * out_isize    # output block   (2 buffers)
                + nb * Cout * span * 4                # live f32 accumulator
                + 2 * Cout * 9 * Cin * op_isize       # weights
                + 2 * Cout * 4)                       # bias

    divs = _divisors(H)
    ht = None
    if fp(H, 1) <= budget:
        ht = H                                        # whole image per step
    else:
        # Prefer lane-aligned (Ht*Wp % 128 == 0) row blocks.
        for cand in sorted(divs, reverse=True):
            if cand < H and (cand * Wp) % 128 == 0 and fp(cand, 1) <= budget:
                ht = cand
                break
        if ht is None:
            # Fall back to any divisor that fits (masked partial stores, slower
            # but correct) rather than silently overshooting the budget.
            for cand in sorted(divs, reverse=True):
                if cand < H and fp(cand, 1) <= budget:
                    ht = cand
                    break
    if ht is None:
        # TODO(synk): halo-block the input (pl.ANY + manual make_async_copy)
        # instead of keeping the whole flattened image resident for huge Cin*H*W.
        raise ValueError("CNNCell Pallas kernel: no row tiling fits the VMEM budget")

    row_blocks = H // ht

    # Fold small batches into fatter grid steps (amortize per-step overhead),
    # but always keep >= 2 grid steps so both v7x TensorCores stay busy.
    nb = 1
    if row_blocks == 1:
        span = ht * Wp
        while (N % (2 * nb) == 0 and N // (2 * nb) >= 2
               and 2 * nb * span <= 2048 and fp(ht, 2 * nb) <= budget):
            nb *= 2

    # If the grid would collapse to a single step (N == 1, whole image), try to
    # split rows cleanly so a 2-TensorCore part is not left half idle.
    if N // nb == 1 and row_blocks == 1:
        for cand in sorted(divs, reverse=True):
            if (cand < H and H // cand >= 2 and (cand * Wp) % 128 == 0
                    and fp(cand, nb) <= budget):
                ht = cand
                row_blocks = H // cand
                break

    return ht, row_blocks, nb


def cnncell_forward(x_nchw, w_oihw, bias, *, vmem_budget_bytes=None,
                    use_bf16_operands=None):
    """Conv2d(Cin, Cout, 3, stride=1, padding=1) + ReLU  ==  CNNCell.forward."""
    N, Cin, H, W = x_nchw.shape
    Cout = w_oihw.shape[0]
    Wp = W + 2

    if vmem_budget_bytes is None:
        vmem_budget_bytes = _default_vmem_budget()
    if use_bf16_operands is None:
        use_bf16_operands = (x_nchw.dtype == jnp.float32)

    out_dtype = x_nchw.dtype
    op_dtype = jnp.bfloat16 if use_bf16_operands else x_nchw.dtype
    op_isize = jnp.dtype(op_dtype).itemsize
    out_isize = jnp.dtype(out_dtype).itemsize

    # Zero-pad spatially, flatten rows (shared row stride Wp for the input and
    # output slabs), add a 1-element guard at each end so every tap slice is in
    # bounds, and cast operands to bf16.  No transposes anywhere in the wrapper.
    # TODO(synk): do the halo padding inside the kernel (DMA unpadded rows into a
    # zeroed VMEM buffer) to remove this extra HBM pass for very large images.
    x_pad = jnp.pad(x_nchw, ((0, 0), (0, 0), (1, 1), (1, 1)))
    x_flat = jnp.pad(x_pad.reshape(N, Cin, (H + 2) * Wp),
                     ((0, 0), (0, 0), (1, 1))).astype(op_dtype)
    Lg = (H + 2) * Wp + 2

    # Weights as a (Cout, 9*Cin) matrix, columns ordered (ky, kx, ci); bias in f32.
    w_mat = jnp.transpose(w_oihw, (0, 2, 3, 1)).reshape(Cout, 9 * Cin).astype(op_dtype)
    b_2d = bias.reshape(Cout, 1).astype(jnp.float32)

    ht, row_blocks, nb = _pick_tiling(N, H, Wp, Cin, Cout, op_isize, out_isize,
                                      vmem_budget_bytes)
    span = ht * Wp

    kernel = functools.partial(_cnncell_kernel, Wp=Wp, row_blocks=row_blocks, nb=nb)

    cost = pl.CostEstimate(
        flops=int(2 * N * H * W * 9 * Cin * Cout),
        transcendentals=0,
        bytes_accessed=int(x_flat.size * op_isize + w_mat.size * op_isize
                           + b_2d.size * 4 + N * Cout * H * Wp * out_isize))

    out_slab = pl.pallas_call(
        kernel,
        out_shape=jax.ShapeDtypeStruct((N, Cout, H * Wp), out_dtype),
        grid_spec=pltpu.PrefetchScalarGridSpec(
            num_scalar_prefetch=0,
            grid=(N // nb, row_blocks),
            in_specs=[
                # Flattened image(s) for this batch group; block index constant
                # across the row-block axis, so it stays resident per group.
                pl.BlockSpec((nb, Cin, Lg), lambda n, hb: (n, 0, 0)),
                pl.BlockSpec((Cout, 9 * Cin), lambda n, hb: (0, 0)),
                pl.BlockSpec((Cout, 1), lambda n, hb: (0, 0)),
            ],
            out_specs=pl.BlockSpec((nb, Cout, span), lambda n, hb: (n, 0, hb)),
        ),
        compiler_params=pltpu.CompilerParams(
            dimension_semantics=("parallel", "parallel"),
            vmem_limit_bytes=int(vmem_budget_bytes)),
        cost_estimate=cost,
    )(x_flat, w_mat, b_2d)

    # Drop the Wp -> W garbage columns; the result is already NCHW.
    # TODO(synk): expose the (N, Cout, H, Wp) slab layout so a fused consumer can
    # skip this strip (it is an extra HBM pass for large tensors).
    return out_slab.reshape(N, Cout, H, Wp)[:, :, :, 1:1 + W]


if __name__ == "__main__":
    # Deterministic synthetic parameters
    # (moduleList = [Conv2d(4, 8, 3, padding=1), ReLU()]).
    key = jax.random.PRNGKey(0)
    k_x, k_w, k_b = jax.random.split(key, 3)

    N, Cin, H, W = 2, 4, 16, 16
    Cout = 8

    x = jax.random.normal(k_x, (N, Cin, H, W), dtype=jnp.float32)
    w_oihw = jax.random.normal(k_w, (Cout, Cin, 3, 3), dtype=jnp.float32) * 0.1
    bias = jax.random.normal(k_b, (Cout,), dtype=jnp.float32) * 0.1

    out = jax.block_until_ready(cnncell_forward(x, w_oihw, bias))

    # Pure-JAX reference (same semantics as nn.Conv2d(pad=1) + nn.ReLU, NCHW).
    ref = jax.lax.conv_general_dilated(
        x, w_oihw, window_strides=(1, 1), padding="SAME",
        dimension_numbers=("NCHW", "OIHW", "NCHW"))
    ref = jnp.maximum(ref + bias[None, :, None, None], 0.0)

    assert out.shape == (N, Cout, H, W)
    # Tolerance reflects bf16 operands (accumulation is f32 on the MXU).
    assert jnp.allclose(out, ref, atol=5e-2, rtol=5e-2)
    print("KERNEL_OK")
</pallas_src>

<mosaic_0001>
module attributes {stable_mosaic.version = 11 : i64} {
  func.func @_cnncell_kernel(%arg0: i32, %arg1: i32, %arg2: memref<1x4x326xbf16, #tpu.memory_space<vmem>>, %arg3: memref<8x36xbf16, #tpu.memory_space<vmem>>, %arg4: memref<8x1xf32, #tpu.memory_space<vmem>>, %arg5: memref<1x8x288xf32, #tpu.memory_space<vmem>>) attributes {dimension_semantics = [#tpu.dimension_semantics<parallel>, #tpu.dimension_semantics<parallel>], iteration_bounds = array<i64: 2, 1>, scalar_prefetch = 0 : i64, scratch_operands = 0 : i64, tpu.core_type = #tpu.core_type<tc>, window_params = [{transform_indices = @transform_0, window_bounds = array<i64: 1, 4, 326>}, {pipeline_mode = #tpu.pipeline_mode<synchronous>, transform_indices = @transform_1, window_bounds = array<i64: 8, 36>}, {pipeline_mode = #tpu.pipeline_mode<synchronous>, transform_indices = @transform_2, window_bounds = array<i64: 8, 1>}, {transform_indices = @transform_3, window_bounds = array<i64: 1, 8, 288>}]} {
    %c0 = arith.constant 0 : index
    %c0_0 = arith.constant 0 : index
    %c0_1 = arith.constant 0 : index
    %0 = vector.load %arg2[%c0, %c0_0, %c0_1] : memref<1x4x326xbf16, #tpu.memory_space<vmem>>, vector<1x4x288xbf16>
    %1 = vector.shape_cast %0 : vector<1x4x288xbf16> to vector<4x288xbf16>
    %c0_2 = arith.constant 0 : index
    %c0_3 = arith.constant 0 : index
    %2 = vector.load %arg3[%c0_2, %c0_3] : memref<8x36xbf16, #tpu.memory_space<vmem>>, vector<8x4xbf16>
    %cst = arith.constant dense<0.000000e+00> : vector<8x288xf32>
    %3 = tpu.matmul %2, %1, %cst {dimension_numbers = #tpu.dot_dimension_numbers<[1], [0], [0], [1], [0, 0, 1, 1], [], []>} : vector<8x4xbf16>, vector<4x288xbf16>, vector<8x288xf32> -> vector<8x288xf32>
    %c0_4 = arith.constant 0 : index
    %c0_5 = arith.constant 0 : index
    %c1 = arith.constant 1 : index
    %4 = vector.load %arg2[%c0_4, %c0_5, %c1] : memref<1x4x326xbf16, #tpu.memory_space<vmem>>, vector<1x4x288xbf16>
    %5 = vector.shape_cast %4 : vector<1x4x288xbf16> to vector<4x288xbf16>
    %c0_6 = arith.constant 0 : index
    %c4 = arith.constant 4 : index
    %6 = vector.load %arg3[%c0_6, %c4] : memref<8x36xbf16, #tpu.memory_space<vmem>>, vector<8x4xbf16>
    %cst_7 = arith.constant dense<0.000000e+00> : vector<8x288xf32>
    %7 = tpu.matmul %6, %5, %cst_7 {dimension_numbers = #tpu.dot_dimension_numbers<[1], [0], [0], [1], [0, 0, 1, 1], [], []>} : vector<8x4xbf16>, vector<4x288xbf16>, vector<8x288xf32> -> vector<8x288xf32>
    %8 = arith.addf %3, %7 : vector<8x288xf32>
    %c0_8 = arith.constant 0 : index
    %c0_9 = arith.constant 0 : index
    %c2 = arith.constant 2 : index
    %9 = vector.load %arg2[%c0_8, %c0_9, %c2] : memref<1x4x326xbf16, #tpu.memory_space<vmem>>, vector<1x4x288xbf16>
    %10 = vector.shape_cast %9 : vector<1x4x288xbf16> to vector<4x288xbf16>
    %c0_10 = arith.constant 0 : index
    %c8 = arith.constant 8 : index
    %11 = vector.load %arg3[%c0_10, %c8] : memref<8x36xbf16, #tpu.memory_space<vmem>>, vector<8x4xbf16>
    %cst_11 = arith.constant dense<0.000000e+00> : vector<8x288xf32>
    %12 = tpu.matmul %11, %10, %cst_11 {dimension_numbers = #tpu.dot_dimension_numbers<[1], [0], [0], [1], [0, 0, 1, 1], [], []>} : vector<8x4xbf16>, vector<4x288xbf16>, vector<8x288xf32> -> vector<8x288xf32>
    %13 = arith.addf %8, %12 : vector<8x288xf32>
    %c0_12 = arith.constant 0 : index
    %c0_13 = arith.constant 0 : index
    %c18 = arith.constant 18 : index
    %14 = vector.load %arg2[%c0_12, %c0_13, %c18] : memref<1x4x326xbf16, #tpu.memory_space<vmem>>, vector<1x4x288xbf16>
    %15 = vector.shape_cast %14 : vector<1x4x288xbf16> to vector<4x288xbf16>
    %c0_14 = arith.constant 0 : index
    %c12 = arith.constant 12 : index
    %16 = vector.load %arg3[%c0_14, %c12] : memref<8x36xbf16, #tpu.memory_space<vmem>>, vector<8x4xbf16>
    %cst_15 = arith.constant dense<0.000000e+00> : vector<8x288xf32>
    %17 = tpu.matmul %16, %15, %cst_15 {dimension_numbers = #tpu.dot_dimension_numbers<[1], [0], [0], [1], [0, 0, 1, 1], [], []>} : vector<8x4xbf16>, vector<4x288xbf16>, vector<8x288xf32> -> vector<8x288xf32>
    %18 = arith.addf %13, %17 : vector<8x288xf32>
    %c0_16 = arith.constant 0 : index
    %c0_17 = arith.constant 0 : index
    %c19 = arith.constant 19 : index
    %19 = vector.load %arg2[%c0_16, %c0_17, %c19] : memref<1x4x326xbf16, #tpu.memory_space<vmem>>, vector<1x4x288xbf16>
    %20 = vector.shape_cast %19 : vector<1x4x288xbf16> to vector<4x288xbf16>
    %c0_18 = arith.constant 0 : index
    %c16 = arith.constant 16 : index
    %21 = vector.load %arg3[%c0_18, %c16] : memref<8x36xbf16, #tpu.memory_space<vmem>>, vector<8x4xbf16>
    %cst_19 = arith.constant dense<0.000000e+00> : vector<8x288xf32>
    %22 = tpu.matmul %21, %20, %cst_19 {dimension_numbers = #tpu.dot_dimension_numbers<[1], [0], [0], [1], [0, 0, 1, 1], [], []>} : vector<8x4xbf16>, vector<4x288xbf16>, vector<8x288xf32> -> vector<8x288xf32>
    %23 = arith.addf %18, %22 : vector<8x288xf32>
    %c0_20 = arith.constant 0 : index
    %c0_21 = arith.constant 0 : index
    %c20 = arith.constant 20 : index
    %24 = vector.load %arg2[%c0_20, %c0_21, %c20] : memref<1x4x326xbf16, #tpu.memory_space<vmem>>, vector<1x4x288xbf16>
    %25 = vector.shape_cast %24 : vector<1x4x288xbf16> to vector<4x288xbf16>
    %c0_22 = arith.constant 0 : index
    %c20_23 = arith.constant 20 : index
    %26 = vector.load %arg3[%c0_22, %c20_23] : memref<8x36xbf16, #tpu.memory_space<vmem>>, vector<8x4xbf16>
    %cst_24 = arith.constant dense<0.000000e+00> : vector<8x288xf32>
    %27 = tpu.matmul %26, %25, %cst_24 {dimension_numbers = #tpu.dot_dimension_numbers<[1], [0], [0], [1], [0, 0, 1, 1], [], []>} : vector<8x4xbf16>, vector<4x288xbf16>, vector<8x288xf32> -> vector<8x288xf32>
    %28 = arith.addf %23, %27 : vector<8x288xf32>
    %c0_25 = arith.constant 0 : index
    %c0_26 = arith.constant 0 : index
    %c36 = arith.constant 36 : index
    %29 = vector.load %arg2[%c0_25, %c0_26, %c36] : memref<1x4x326xbf16, #tpu.memory_space<vmem>>, vector<1x4x288xbf16>
    %30 = vector.shape_cast %29 : vector<1x4x288xbf16> to vector<4x288xbf16>
    %c0_27 = arith.constant 0 : index
    %c24 = arith.constant 24 : index
    %31 = vector.load %arg3[%c0_27, %c24] : memref<8x36xbf16, #tpu.memory_space<vmem>>, vector<8x4xbf16>
    %cst_28 = arith.constant dense<0.000000e+00> : vector<8x288xf32>
    %32 = tpu.matmul %31, %30, %cst_28 {dimension_numbers = #tpu.dot_dimension_numbers<[1], [0], [0], [1], [0, 0, 1, 1], [], []>} : vector<8x4xbf16>, vector<4x288xbf16>, vector<8x288xf32> -> vector<8x288xf32>
    %33 = arith.addf %28, %32 : vector<8x288xf32>
    %c0_29 = arith.constant 0 : index
    %c0_30 = arith.constant 0 : index
    %c37 = arith.constant 37 : index
    %34 = vector.load %arg2[%c0_29, %c0_30, %c37] : memref<1x4x326xbf16, #tpu.memory_space<vmem>>, vector<1x4x288xbf16>
    %35 = vector.shape_cast %34 : vector<1x4x288xbf16> to vector<4x288xbf16>
    %c0_31 = arith.constant 0 : index
    %c28 = arith.constant 28 : index
    %36 = vector.load %arg3[%c0_31, %c28] : memref<8x36xbf16, #tpu.memory_space<vmem>>, vector<8x4xbf16>
    %cst_32 = arith.constant dense<0.000000e+00> : vector<8x288xf32>
    %37 = tpu.matmul %36, %35, %cst_32 {dimension_numbers = #tpu.dot_dimension_numbers<[1], [0], [0], [1], [0, 0, 1, 1], [], []>} : vector<8x4xbf16>, vector<4x288xbf16>, vector<8x288xf32> -> vector<8x288xf32>
    %38 = arith.addf %33, %37 : vector<8x288xf32>
    %c0_33 = arith.constant 0 : index
    %c0_34 = arith.constant 0 : index
    %c38 = arith.constant 38 : index
    %39 = vector.load %arg2[%c0_33, %c0_34, %c38] : memref<1x4x326xbf16, #tpu.memory_space<vmem>>, vector<1x4x288xbf16>
    %40 = vector.shape_cast %39 : vector<1x4x288xbf16> to vector<4x288xbf16>
    %c0_35 = arith.constant 0 : index
    %c32 = arith.constant 32 : index
    %41 = vector.load %arg3[%c0_35, %c32] : memref<8x36xbf16, #tpu.memory_space<vmem>>, vector<8x4xbf16>
    %cst_36 = arith.constant dense<0.000000e+00> : vector<8x288xf32>
    %42 = tpu.matmul %41, %40, %cst_36 {dimension_numbers = #tpu.dot_dimension_numbers<[1], [0], [0], [1], [0, 0, 1, 1], [], []>} : vector<8x4xbf16>, vector<4x288xbf16>, vector<8x288xf32> -> vector<8x288xf32>
    %43 = arith.addf %38, %42 : vector<8x288xf32>
    %c0_37 = arith.constant 0 : index
    %c0_38 = arith.constant 0 : index
    %44 = vector.load %arg4[%c0_37, %c0_38] : memref<8x1xf32, #tpu.memory_space<vmem>>, vector<8x1xf32>
    %45 = vector.broadcast %44 : vector<8x1xf32> to vector<8x288xf32>
    %46 = arith.addf %43, %45 : vector<8x288xf32>
    %cst_39 = arith.constant 0.000000e+00 : f32
    %47 = vector.broadcast %cst_39 : f32 to vector<8x288xf32>
    %48 = arith.maximumf %46, %47 : vector<8x288xf32>
    %c0_40 = arith.constant 0 : index
    %c0_41 = arith.constant 0 : index
    %c0_42 = arith.constant 0 : index
    %49 = vector.load %arg5[%c0_40, %c0_41, %c0_42] : memref<1x8x288xf32, #tpu.memory_space<vmem>>, vector<1x8x288xf32>
    %50 = vector.shape_cast %49 : vector<1x8x288xf32> to vector<8x288xf32>
    %51 = vector.shape_cast %48 : vector<8x288xf32> to vector<1x8x288xf32>
    tpu.vector_store %arg5[%c0_40, %c0_41, %c0_42], %51 {strides = array<i32>} : memref<1x8x288xf32, #tpu.memory_space<vmem>>, vector<1x8x288xf32>,
    return
  }
  func.func @transform_0(%arg0: i32, %arg1: i32) -> (i32, i32, i32) {
    %c0_i32 = arith.constant 0 : i32
    %c0_i32_0 = arith.constant 0 : i32
    %c0_i32_1 = arith.constant 0 : i32
    return %arg0, %c0_i32, %c0_i32_0 : i32, i32, i32
  }
  func.func @transform_1(%arg0: i32, %arg1: i32) -> (i32, i32) {
    %c0_i32 = arith.constant 0 : i32
    %c0_i32_0 = arith.constant 0 : i32
    %c0_i32_1 = arith.constant 0 : i32
    return %c0_i32, %c0_i32_0 : i32, i32
  }
  func.func @transform_2(%arg0: i32, %arg1: i32) -> (i32, i32) {
    %c0_i32 = arith.constant 0 : i32
    %c0_i32_0 = arith.constant 0 : i32
    %c0_i32_1 = arith.constant 0 : i32
    return %c0_i32, %c0_i32_0 : i32, i32
  }
  func.func @transform_3(%arg0: i32, %arg1: i32) -> (i32, i32, i32) {
    %c0_i32 = arith.constant 0 : i32
    %c0_i32_0 = arith.constant 0 : i32
    return %arg0, %c0_i32, %arg1 : i32, i32, i32
  }
}

</mosaic_0001>

<llo_original>
// kernel: tpu_custom_call.1
$region0: #{tpu_custom_call.1}
  #allocation0 [shape = 'u32[]', space=smem, size = 0x4, offset = 0x4, fixed_abs, tag = 'smem constant byte address 0x4 - core index']
  #allocation1 [shape = 'u32[72,128]{1,0:T(1,128)}', space=vmem, size = 0x9000, scoped, tag = 'internal scratch']
  %s0 = inlined_call_operand.hbm [shape: bf16[2,4,326], index: 0, kind: input, shape index: {}]
  %s1 = inlined_call_operand.vmem [shape: bf16[8,36], index: 1, kind: input, shape index: {}]
  %s2 = inlined_call_operand.vmem [shape: f32[8,1], index: 2, kind: input, shape index: {}]
  %s3 = inlined_call_operand.hbm [shape: f32[2,8,288], index: 3, kind: output, shape index: {}]
  %s4 = sld [smem:[#allocation0]]
  $region49: #{tpu_custom_call.1} parent=0
    _
  %s6 = ssub.s32 1, %s4
  %s7 = scalar_select 0, %s6, %s4
  $region1: #{tpu_custom_call.1} parent=0
    #allocation2 [shape = 'u8[6144]{0}', space=vmem, size = 0x1800, scoped, tag = 'input window, operand 0']
    #allocation3 [shape = 's32[2]{0}', space=sflag, size = 0x8, scoped, tag = 'scoped memory for tpu_custom_call.1']
    #allocation4 [shape = 's32[2]{0}', space=sflag, size = 0x8, scoped, tag = 'scoped memory for tpu_custom_call.1']
    #allocation5 [shape = 'u8[24576]{0}', space=vmem, size = 0x6000, scoped, tag = 'output window, operand 0']
    %8 = vsyncpa [#allocation3], 0
    %s9 = scalar_lea.sflag [#allocation3], 1
    %10 = vsyncpa %s9, 0
    %11 = vsyncpa [#allocation4], 0
    %s12 = scalar_lea.sflag [#allocation4], 1
    %13 = vsyncpa %s12, 0
    loop: start=0, step=1, limit=4
    $region2: #{tpu_custom_call.1} parent=1 // loop_pre_header
      _
    $region3: #{tpu_custom_call.1} parent=1 // loop_header
      %s15 = sphi 0, %s19
      %p16 = scmp.ge.s32.totalorder %s15, 4
      %s22 = sphi 0, %s34
      %s23 = sphi 0, %s30
      %s24 = sphi 0, %s22
      %s25 = sphi 0, %s23
      %s26 = sphi 0, %s24
      %s27 = sphi 0, %s25
      %s37 = sphi 0, %s39
      %s40 = sphi 0, %s37
      %s41 = sphi 0, %s40
      %s57 = sphi 0, %s41
      %s61 = sphi 0, %s61
      %s63 = sphi 0, %s61
      %s64 = sphi 0, %s63
      %s78 = sphi 0, %s64
      %s82 = sphi 0, %s82
      %s84 = sphi 0, %s82
      %s85 = sphi 0, %s84
      %s99 = sphi 0, %s85
      %s107 = sphi 0, %s109
      %s110 = sphi 0, %s107
      %s111 = sphi 0, %s110
      %s127 = sphi 0, %s111
    $region4: #{tpu_custom_call.1} parent=1 // loop_header_branch
      %18 = sbr.rel (%p16) target = $region8
    $region5: #{tpu_custom_call.1} parent=1 // loop_body
      %s20 = ssub.s32 %s15, 1
      %s21 = ssub.s32 %s15, 2
      %s28 = sadd.s32 1, %s23
      %p29 = scmp.ge.s32.totalorder %s28, 1
      %s30 = scalar_select %p29, 0, %s28
      %s31 = sadd.s32 1, %s22
      %s32 = scalar_select %p29, %s31, %s22
      %p33 = scmp.ge.s32.totalorder %s32, 2
      %s34 = scalar_select %p33, 0, %s32
      %s35 = ssub.s32 %s22, %s34
      %p36 = scmp.eq.s32.totalorder %s35, 0
      %s38 = sadd.s32 %s37, 1
      %s39 = scalar_select %p36, %s37, %s38
      %p42 = pneg %p36
      %p43 = scmp.eq.s32.totalorder %s15, 1
      %p44 = por %p42, %p43
      %p45 = scmp.ne.s32.totalorder %s37, %s40
      %p46 = scmp.eq.s32.totalorder %s15, 0
      %p47 = por %p45, %p46
      %p48 = scmp.ne.s32.totalorder %s37, %s40
      %p49 = scmp.eq.s32.totalorder %s20, 1
      %p50 = por %p48, %p49
      %p51 = scmp.ne.s32.totalorder %s40, %s41
      %p52 = scmp.eq.s32.totalorder %s20, 0
      %p53 = por %p51, %p52
      %p54 = scmp.ne.s32.totalorder %s40, %s41
      %p55 = scmp.eq.s32.totalorder %s21, 1
      %p56 = por %p54, %p55
      %p58 = scmp.ne.s32.totalorder %s41, %s57
      %p59 = scmp.eq.s32.totalorder %s21, 0
      %p60 = por %p58, %p59
      %s62 = sadd.s32 %s61, 1
      %p65 = scmp.eq.s32.totalorder %s15, 1
      %p66 = scmp.ne.s32.totalorder %s61, %s63
      %p67 = scmp.eq.s32.totalorder %s15, 0
      %p68 = por %p66, %p67
      %p69 = scmp.ne.s32.totalorder %s61, %s63
      %p70 = scmp.eq.s32.totalorder %s20, 1
      %p71 = por %p69, %p70
      %p72 = scmp.ne.s32.totalorder %s63, %s64
      %p73 = scmp.eq.s32.totalorder %s20, 0
      %p74 = por %p72, %p73
      %p75 = scmp.ne.s32.totalorder %s63, %s64
      %p76 = scmp.eq.s32.totalorder %s21, 1
      %p77 = por %p75, %p76
      %p79 = scmp.ne.s32.totalorder %s64, %s78
      %p80 = scmp.eq.s32.totalorder %s21, 0
      %p81 = por %p79, %p80
      %s83 = sadd.s32 %s82, 1
      %p86 = scmp.eq.s32.totalorder %s15, 1
      %p87 = scmp.ne.s32.totalorder %s82, %s84
      %p88 = scmp.eq.s32.totalorder %s15, 0
      %p89 = por %p87, %p88
      %p90 = scmp.ne.s32.totalorder %s82, %s84
      %p91 = scmp.eq.s32.totalorder %s20, 1
      %p92 = por %p90, %p91
      %p93 = scmp.ne.s32.totalorder %s84, %s85
      %p94 = scmp.eq.s32.totalorder %s20, 0
      %p95 = por %p93, %p94
      %p96 = scmp.ne.s32.totalorder %s84, %s85
      %p97 = scmp.eq.s32.totalorder %s21, 1
      %p98 = por %p96, %p97
      %p100 = scmp.ne.s32.totalorder %s85, %s99
      %p101 = scmp.eq.s32.totalorder %s21, 0
      %p102 = por %p100, %p101
      %s103 = ssub.s32 %s22, %s34
      %s104 = ssub.s32 %s23, %s30
      %s105 = sor.u32 %s103, %s104
      %p106 = scmp.eq.s32.totalorder %s105, 0
      %s108 = sadd.s32 %s107, 1
      %s109 = scalar_select %p106, %s107, %s108
      %p112 = pneg %p106
      %p113 = scmp.eq.s32.totalorder %s15, 1
      %p114 = por %p112, %p113
      %p115 = scmp.ne.s32.totalorder %s107, %s110
      %p116 = scmp.eq.s32.totalorder %s15, 0
      %p117 = por %p115, %p116
      %p118 = scmp.ne.s32.totalorder %s107, %s110
      %p119 = scmp.eq.s32.totalorder %s20, 1
      %p120 = por %p118, %p119
      %p121 = scmp.ne.s32.totalorder %s110, %s111
      %p122 = scmp.eq.s32.totalorder %s20, 0
      %p123 = por %p121, %p122
      %p124 = scmp.ne.s32.totalorder %s110, %s111
      %p125 = scmp.eq.s32.totalorder %s21, 1
      %p126 = por %p124, %p125
      %p128 = scmp.ne.s32.totalorder %s111, %s127
      %p129 = scmp.eq.s32.totalorder %s21, 0
      %p130 = por %p128, %p129
      %p131 = scmp.le.s32.totalorder 1, %s15
      %p132 = scmp.lt.s32.totalorder %s15, 3
      %p133 = pnand %p131, %p132
      %p134 = pneg %p133
      // Predicated region
      $region9: #{tpu_custom_call.1} parent=5 // pred_check
        _
      $region10: #{tpu_custom_call.1} parent=5 // pred_check_branch
        %136 = sbr.rel (%p133) target = $region12
      $region11: #{tpu_custom_call.1} parent=5 // pred_region
        %s137 = ssub.s32 %s15, 1
        // Predicated region
        $region13: #{tpu_custom_call.1} parent=11 // pred_check
          %p138 = pneg %p74
        $region14: #{tpu_custom_call.1} parent=11 // pred_check_branch
          %140 = sbr.rel (%p138) target = $region16
        $region15: #{tpu_custom_call.1} parent=11 // pred_region
          _
        $region16: #{tpu_custom_call.1} parent=11 // pred_fallthru
          _
        // Predicated region
        $region17: #{tpu_custom_call.1} parent=11 // pred_check
          %p141 = pneg %p95
        $region18: #{tpu_custom_call.1} parent=11 // pred_check_branch
          %143 = sbr.rel (%p141) target = $region20
        $region19: #{tpu_custom_call.1} parent=11 // pred_region
          _
        $region20: #{tpu_custom_call.1} parent=11 // pred_fallthru
          _
      $region12: #{tpu_custom_call.1} parent=5 // pred_fallthru
        _
      %p144 = scmp.lt.s32.totalorder %s15, 2
      // Predicated region
      $region21: #{tpu_custom_call.1} parent=5 // pred_check
        %p145 = pneg %p144
      $region22: #{tpu_custom_call.1} parent=5 // pred_check_branch
        %147 = sbr.rel (%p145) target = $region24
      $region23: #{tpu_custom_call.1} parent=5 // pred_region
        // Predicated region
        $region25: #{tpu_custom_call.1} parent=23 // pred_check
          %p148 = pneg %p47
        $region26: #{tpu_custom_call.1} parent=23 // pred_check_branch
          %150 = sbr.rel (%p148) target = $region28
        $region27: #{tpu_custom_call.1} parent=23 // pred_region
          %s151 = sand.u32 %s37, 1
          %s152 = scalar_lea.sflag [#allocation3], %s151
          %s153 = sand.u32 %s37, 1
          %s154 = smul.addr %s153, 6
          %s155 = scalar_lea.vmem [#allocation2], %s154
          %157 = vsyncadd %s152, 0
          %s158 = smul.addr %s22, 3
          %s159 = smul.addr %s158, 2
          %s160 = scalar_lea.hbm %s0, %s159
          %s162 = sshll.u32 %s160, 4
          %s163 = int_to_ptr.hbm [resolvable:$true] %s162
          %s164 = sshll.u32 %s155, 4
          %s165 = int_to_ptr.vmem [resolvable:$true] %s164
          %167 = dma.hbm_to_vmem [thread:$0]  %s163, 96, %s165, %s152
        $region28: #{tpu_custom_call.1} parent=23 // pred_fallthru
          _
      $region24: #{tpu_custom_call.1} parent=5 // pred_fallthru
        _
      %p168 = scmp.le.s32.totalorder 1, %s15
      %p169 = scmp.lt.s32.totalorder %s15, 3
      %p170 = pnand %p168, %p169
      %p171 = pneg %p170
      // Predicated region
      $region29: #{tpu_custom_call.1} parent=5 // pred_check
        _
      $region30: #{tpu_custom_call.1} parent=5 // pred_check_branch
        %173 = sbr.rel (%p170) target = $region32
      $region31: #{tpu_custom_call.1} parent=5 // pred_region
        %s174 = ssub.s32 %s15, 1
        %s175 = sand.u32 %s40, 1
        %s176 = scalar_lea.sflag [#allocation3], %s175
        %s177 = sand.u32 %s40, 1
        %s178 = smul.addr %s177, 6
        %s179 = scalar_lea.vmem [#allocation2], %s178
        // Predicated region
        $region33: #{tpu_custom_call.1} parent=31 // pred_check
          %p180 = pneg %p53
        $region34: #{tpu_custom_call.1} parent=31 // pred_check_branch
          %182 = sbr.rel (%p180) target = $region36
        $region35: #{tpu_custom_call.1} parent=31 // pred_region
          %184 = dma.done %s176, 96
        $region36: #{tpu_custom_call.1} parent=31 // pred_fallthru
          _
        %s185 = sand.u32 %s40, 1
        %s186 = scalar_lea.sflag [#allocation3], %s185
        %s187 = sand.u32 %s40, 1
        %s188 = smul.addr %s187, 6
        %s189 = scalar_lea.vmem [#allocation2], %s188
        %p190 = pneg %p53
        %p191 = pneg %p50
        %p192 = pneg %p74
        %p193 = pneg %p71
        %p194 = pneg %p95
        %p195 = pneg %p92
        %p196 = pneg %p123
        %p197 = pneg %p120
        %s198 = sand.u32 %s110, 1
        %s199 = scalar_lea.sflag [#allocation4], %s198
        %s200 = sand.u32 %s110, 1
        %s201 = smul.addr %s200, 24
        %s202 = scalar_lea.vmem [#allocation5], %s201
        %s203 = smul.u32 3, %s25
        %v205 = vld [vmem:[%s179] sm:$0x3f]
        %v206 = vld [vmem:[%s1] sm:$0xf]
        %v208 = vunpack.c.l.b16 %v206
        %v209 = vpack.c.b16 %v208, %v208
        %210 = vrot.lane.b32.xlu0 %v209, 124
        %v211 = vpop.permute.xlu0 %210
        %213 = vst [vmem:[#allocation1] ss:$4 sm:$0xff] %v205
        %v214 = vld.sshfl [vmem:[#allocation1] sm:$0xff pattern:$0x73625140]
        %v216 = vld.sshfl [vmem:[#allocation1 + $0x8] sm:$0xff pattern:$0x73625140]
        %v218 = vld.sshfl [vmem:[#allocation1 + $0x10] sm:$0xff pattern:$0x73625140]
        %220 = vrot.lane.b32.xlu0 %v214, 127
        %v221 = vpop.permute.xlu0 %220
        %222 = vrot.lane.b32.xlu0 %v216, 127
        %v223 = vpop.permute.xlu0 %222
        %224 = vrot.lane.b32.xlu0 %v218, 127
        %v225 = vpop.permute.xlu0 %224
        %vm226 = vcmask 1039360
        %v227 = vsel %vm226, %v221, %v223
        %v228 = vsel %vm226, %v223, %v225
        %vm229 = vcmask 31744
        %v231 = vsel %vm229, %v211, 0
        %vm233 = vcmask 1041408
        %v235 = vsel %vm233, %v227, 0
        %v238 = vsel %vm233, %v228, 0
        %v241 = vsel %vm233, %v225, 0
        %243 = vmatpush.bf16.msra.mxu0 0
        %244 = vmatpush.bf16.msra.mxu0 0
        %245 = vmatpush.bf16.msra.mxu0 0
        %246 = vmatpush.bf16.msra.mxu0 0
        %247 = vmatpush.bf16.msra.mxu0 0
        %248 = vmatpush.bf16.msra.mxu0 0
        %249 = vmatpush.bf16.msra.mxu0 0
        %250 = vmatpush.bf16.msra.mxu0 %v235
        %251 = vmatmul.bf16.gmra.mxu0 %v231
        %v252 = vpop.f32.mrf.mxu0
        %v253 = vadd.f32 0.0, %v252
        %v254 = vpop.f32.mrf.mxu0
        %255 = vdwg.mxu0
        %256 = vmatpush.bf16.msra.mxu0 0
        %257 = vmatpush.bf16.msra.mxu0 0
        %258 = vmatpush.bf16.msra.mxu0 0
        %259 = vmatpush.bf16.msra.mxu0 0
        %260 = vmatpush.bf16.msra.mxu0 0
        %261 = vmatpush.bf16.msra.mxu0 0
        %262 = vmatpush.bf16.msra.mxu0 0
        %263 = vmatpush.bf16.msra.mxu0 %v238
        %264 = vmatmul.bf16.gmra.mxu0 %v231
        %v265 = vpop.f32.mrf.mxu0
        %v266 = vadd.f32 0.0, %v265
        %v267 = vpop.f32.mrf.mxu0
        %268 = vdwg.mxu0
        %269 = vmatpush.bf16.msra.mxu0 0
        %270 = vmatpush.bf16.msra.mxu0 0
        %271 = vmatpush.bf16.msra.mxu0 0
        %272 = vmatpush.bf16.msra.mxu0 0
        %273 = vmatpush.bf16.msra.mxu0 0
        %274 = vmatpush.bf16.msra.mxu0 0
        %275 = vmatpush.bf16.msra.mxu0 0
        %276 = vmatpush.bf16.msra.mxu0 %v241
        %277 = vmatmul.bf16.gmra.mxu0 %v231
        %v278 = vpop.f32.mrf.mxu0
        %v279 = vadd.f32 0.0, %v278
        %v280 = vpop.f32.mrf.mxu0
        %281 = vdwg.mxu0
        %282 = vst [vmem:[#allocation1] ss:$4 sm:$0xff] %v205
        %v283 = vld.sshfl [vmem:[#allocation1] sm:$0xff pattern:$0x73625140]
        %v284 = vld.sshfl [vmem:[#allocation1 + $0x8] sm:$0xff pattern:$0x73625140]
        %v285 = vld.sshfl [vmem:[#allocation1 + $0x10] sm:$0xff pattern:$0x73625140]
        %v287 = vsel %vm229, %v206, 0
        %v289 = vsel %vm233, %v283, 0
        %v291 = vsel %vm233, %v284, 0
        %v293 = vsel %vm233, %v285, 0
        %295 = vmatpush.bf16.msra.mxu0 0
        %296 = vmatpush.bf16.msra.mxu0 0
        %297 = vmatpush.bf16.msra.mxu0 0
        %298 = vmatpush.bf16.msra.mxu0 0
        %299 = vmatpush.bf16.msra.mxu0 0
        %300 = vmatpush.bf16.msra.mxu0 0
        %301 = vmatpush.bf16.msra.mxu0 0
        %302 = vmatpush.bf16.msra.mxu0 %v289
        %303 = vmatmul.bf16.gmra.mxu0 %v287
        %v304 = vpop.f32.mrf.mxu0
        %v305 = vadd.f32 %v253, %v304
        %v306 = vpop.f32.mrf.mxu0
        %307 = vdwg.mxu0
        %308 = vmatpush.bf16.msra.mxu0 0
        %309 = vmatpush.bf16.msra.mxu0 0
        %310 = vmatpush.bf16.msra.mxu0 0
        %311 = vmatpush.bf16.msra.mxu0 0
        %312 = vmatpush.bf16.msra.mxu0 0
        %313 = vmatpush.bf16.msra.mxu0 0
        %314 = vmatpush.bf16.msra.mxu0 0
        %315 = vmatpush.bf16.msra.mxu0 %v291
        %316 = vmatmul.bf16.gmra.mxu0 %v287
        %v317 = vpop.f32.mrf.mxu0
        %v318 = vadd.f32 %v266, %v317
        %v319 = vpop.f32.mrf.mxu0
        %320 = vdwg.mxu0
        %321 = vmatpush.bf16.msra.mxu0 0
        %322 = vmatpush.bf16.msra.mxu0 0
        %323 = vmatpush.bf16.msra.mxu0 0
        %324 = vmatpush.bf16.msra.mxu0 0
        %325 = vmatpush.bf16.msra.mxu0 0
        %326 = vmatpush.bf16.msra.mxu0 0
        %327 = vmatpush.bf16.msra.mxu0 0
        %328 = vmatpush.bf16.msra.mxu0 %v293
        %329 = vmatmul.bf16.gmra.mxu0 %v287
        %v330 = vpop.f32.mrf.mxu0
        %v331 = vadd.f32 %v279, %v330
        %v332 = vpop.f32.mrf.mxu0
        %333 = vdwg.mxu0
        %v334 = vld [vmem:[%s179] sm:$0x3f]
        %v335 = vld [vmem:[%s1] sm:$0xf]
        %v337 = vunpack.c.l.b16 %v335
        %v338 = vpack.c.b16 %v337, %v337
        %339 = vrot.lane.b32.xlu0 %v338, 120
        %v340 = vpop.permute.xlu0 %339
        %342 = vst [vmem:[#allocation1] ss:$4 sm:$0xff] %v334
        %v343 = vld.sshfl [vmem:[#allocation1] sm:$0xff pattern:$0x73625140]
        %v345 = vld.sshfl [vmem:[#allocation1 + $0x8] sm:$0xff pattern:$0x73625140]
        %v347 = vld.sshfl [vmem:[#allocation1 + $0x10] sm:$0xff pattern:$0x73625140]
        %349 = vrot.lane.b32.xlu0 %v343, 126
        %v350 = vpop.permute.xlu0 %349
        %351 = vrot.lane.b32.xlu0 %v345, 126
        %v352 = vpop.permute.xlu0 %351
        %353 = vrot.lane.b32.xlu0 %v347, 126
        %v354 = vpop.permute.xlu0 %353
        %vm355 = vcmask 1031168
        %v356 = vsel %vm355, %v350, %v352
        %v357 = vsel %vm355, %v352, %v354
        %v359 = vsel %vm229, %v340, 0
        %v362 = vsel %vm233, %v356, 0
        %v365 = vsel %vm233, %v357, 0
        %v368 = vsel %vm233, %v354, 0
        %370 = vmatpush.bf16.msra.mxu0 0
        %371 = vmatpush.bf16.msra.mxu0 0
        %372 = vmatpush.bf16.msra.mxu0 0
        %373 = vmatpush.bf16.msra.mxu0 0
        %374 = vmatpush.bf16.msra.mxu0 0
        %375 = vmatpush.bf16.msra.mxu0 0
        %376 = vmatpush.bf16.msra.mxu0 0
        %377 = vmatpush.bf16.msra.mxu0 %v362
        %378 = vmatmul.bf16.gmra.mxu0 %v359
        %v379 = vpop.f32.mrf.mxu0
        %v380 = vadd.f32 0.0, %v379
        %v381 = vpop.f32.mrf.mxu0
        %382 = vdwg.mxu0
        %383 = vmatpush.bf16.msra.mxu0 0
        %384 = vmatpush.bf16.msra.mxu0 0
        %385 = vmatpush.bf16.msra.mxu0 0
        %386 = vmatpush.bf16.msra.mxu0 0
        %387 = vmatpush.bf16.msra.mxu0 0
        %388 = vmatpush.bf16.msra.mxu0 0
        %389 = vmatpush.bf16.msra.mxu0 0
        %390 = vmatpush.bf16.msra.mxu0 %v365
        %391 = vmatmul.bf16.gmra.mxu0 %v359
        %v392 = vpop.f32.mrf.mxu0
        %v393 = vadd.f32 0.0, %v392
        %v394 = vpop.f32.mrf.mxu0
        %395 = vdwg.mxu0
        %396 = vmatpush.bf16.msra.mxu0 0
        %397 = vmatpush.bf16.msra.mxu0 0
        %398 = vmatpush.bf16.msra.mxu0 0
        %399 = vmatpush.bf16.msra.mxu0 0
        %400 = vmatpush.bf16.msra.mxu0 0
        %401 = vmatpush.bf16.msra.mxu0 0
        %402 = vmatpush.bf16.msra.mxu0 0
        %403 = vmatpush.bf16.msra.mxu0 %v368
        %404 = vmatmul.bf16.gmra.mxu0 %v359
        %v405 = vpop.f32.mrf.mxu0
        %v406 = vadd.f32 0.0, %v405
        %v407 = vpop.f32.mrf.mxu0
        %408 = vdwg.mxu0
        %v409 = vadd.f32 %v305, %v380
        %v410 = vadd.f32 %v318, %v393
        %v411 = vadd.f32 %v331, %v406
        %v412 = vld [vmem:[%s179] sm:$0x3f]
        %v413 = vld [vmem:[%s1] sm:$0xf]
        %v415 = vunpack.c.l.b16 %v413
        %v416 = vpack.c.b16 %v415, %v415
        %417 = vrot.lane.b32.xlu0 %v416, 116
        %v418 = vpop.permute.xlu0 %417
        %420 = vst [vmem:[#allocation1] ss:$4 sm:$0xff] %v412
        %v421 = vld.sshfl [vmem:[#allocation1] sm:$0xff pattern:$0x73625140]
        %v423 = vld.sshfl [vmem:[#allocation1 + $0x8] sm:$0xff pattern:$0x73625140]
        %v425 = vld.sshfl [vmem:[#allocation1 + $0x10] sm:$0xff pattern:$0x73625140]
        %427 = vrot.lane.b32.xlu0 %v421, 110
        %v428 = vpop.permute.xlu0 %427
        %429 = vrot.lane.b32.xlu0 %v423, 110
        %v430 = vpop.permute.xlu0 %429
        %431 = vrot.lane.b32.xlu0 %v425, 110
        %v432 = vpop.permute.xlu0 %431
        %vm433 = vcmask 900096
        %v434 = vsel %vm433, %v428, %v430
        %v435 = vsel %vm433, %v430, %v432
        %v437 = vsel %vm229, %v418, 0
        %v440 = vsel %vm233, %v434, 0
        %v443 = vsel %vm233, %v435, 0
        %v446 = vsel %vm233, %v432, 0
        %448 = vmatpush.bf16.msra.mxu0 0
        %449 = vmatpush.bf16.msra.mxu0 0
        %450 = vmatpush.bf16.msra.mxu0 0
        %451 = vmatpush.bf16.msra.mxu0 0
        %452 = vmatpush.bf16.msra.mxu0 0
        %453 = vmatpush.bf16.msra.mxu0 0
        %454 = vmatpush.bf16.msra.mxu0 0
        %455 = vmatpush.bf16.msra.mxu0 %v440
        %456 = vmatmul.bf16.gmra.mxu0 %v437
        %v457 = vpop.f32.mrf.mxu0
        %v458 = vadd.f32 0.0, %v457
        %v459 = vpop.f32.mrf.mxu0
        %460 = vdwg.mxu0
        %461 = vmatpush.bf16.msra.mxu0 0
        %462 = vmatpush.bf16.msra.mxu0 0
        %463 = vmatpush.bf16.msra.mxu0 0
        %464 = vmatpush.bf16.msra.mxu0 0
        %465 = vmatpush.bf16.msra.mxu0 0
        %466 = vmatpush.bf16.msra.mxu0 0
        %467 = vmatpush.bf16.msra.mxu0 0
        %468 = vmatpush.bf16.msra.mxu0 %v443
        %469 = vmatmul.bf16.gmra.mxu0 %v437
        %v470 = vpop.f32.mrf.mxu0
        %v471 = vadd.f32 0.0, %v470
        %v472 = vpop.f32.mrf.mxu0
        %473 = vdwg.mxu0
        %474 = vmatpush.bf16.msra.mxu0 0
        %475 = vmatpush.bf16.msra.mxu0 0
        %476 = vmatpush.bf16.msra.mxu0 0
        %477 = vmatpush.bf16.msra.mxu0 0
        %478 = vmatpush.bf16.msra.mxu0 0
        %479 = vmatpush.bf16.msra.mxu0 0
        %480 = vmatpush.bf16.msra.mxu0 0
        %481 = vmatpush.bf16.msra.mxu0 %v446
        %482 = vmatmul.bf16.gmra.mxu0 %v437
        %v483 = vpop.f32.mrf.mxu0
        %v484 = vadd.f32 0.0, %v483
        %v485 = vpop.f32.mrf.mxu0
        %486 = vdwg.mxu0
        %v487 = vadd.f32 %v409, %v458
        %v488 = vadd.f32 %v410, %v471
        %v489 = vadd.f32 %v411, %v484
        %v490 = vld [vmem:[%s179] sm:$0x3f]
        %v491 = vld [vmem:[%s1] sm:$0xf]
        %v493 = vunpack.c.l.b16 %v491
        %v494 = vpack.c.b16 %v493, %v493
        %495 = vrot.lane.b32.xlu0 %v494, 112
        %v496 = vpop.permute.xlu0 %495
        %498 = vst [vmem:[#allocation1] ss:$4 sm:$0xff] %v490
        %v499 = vld.sshfl [vmem:[#allocation1] sm:$0xff pattern:$0x73625140]
        %v501 = vld.sshfl [vmem:[#allocation1 + $0x8] sm:$0xff pattern:$0x73625140]
        %v503 = vld.sshfl [vmem:[#allocation1 + $0x10] sm:$0xff pattern:$0x73625140]
        %505 = vrot.lane.b32.xlu0 %v499, 109
        %v506 = vpop.permute.xlu0 %505
        %507 = vrot.lane.b32.xlu0 %v501, 109
        %v508 = vpop.permute.xlu0 %507
        %509 = vrot.lane.b32.xlu0 %v503, 109
        %v510 = vpop.permute.xlu0 %509
        %vm511 = vcmask 891904
        %v512 = vsel %vm511, %v506, %v508
        %v513 = vsel %vm511, %v508, %v510
        %v515 = vsel %vm229, %v496, 0
        %v518 = vsel %vm233, %v512, 0
        %v521 = vsel %vm233, %v513, 0
        %v524 = vsel %vm233, %v510, 0
        %526 = vmatpush.bf16.msra.mxu0 0
        %527 = vmatpush.bf16.msra.mxu0 0
        %528 = vmatpush.bf16.msra.mxu0 0
        %529 = vmatpush.bf16.msra.mxu0 0
        %530 = vmatpush.bf16.msra.mxu0 0
        %531 = vmatpush.bf16.msra.mxu0 0
        %532 = vmatpush.bf16.msra.mxu0 0
        %533 = vmatpush.bf16.msra.mxu0 %v518
        %534 = vmatmul.bf16.gmra.mxu0 %v515
        %v535 = vpop.f32.mrf.mxu0
        %v536 = vadd.f32 0.0, %v535
        %v537 = vpop.f32.mrf.mxu0
        %538 = vdwg.mxu0
        %539 = vmatpush.bf16.msra.mxu0 0
        %540 = vmatpush.bf16.msra.mxu0 0
        %541 = vmatpush.bf16.msra.mxu0 0
        %542 = vmatpush.bf16.msra.mxu0 0
        %543 = vmatpush.bf16.msra.mxu0 0
        %544 = vmatpush.bf16.msra.mxu0 0
        %545 = vmatpush.bf16.msra.mxu0 0
        %546 = vmatpush.bf16.msra.mxu0 %v521
        %547 = vmatmul.bf16.gmra.mxu0 %v515
        %v548 = vpop.f32.mrf.mxu0
        %v549 = vadd.f32 0.0, %v548
        %v550 = vpop.f32.mrf.mxu0
        %551 = vdwg.mxu0
        %552 = vmatpush.bf16.msra.mxu0 0
        %553 = vmatpush.bf16.msra.mxu0 0
        %554 = vmatpush.bf16.msra.mxu0 0
        %555 = vmatpush.bf16.msra.mxu0 0
        %556 = vmatpush.bf16.msra.mxu0 0
        %557 = vmatpush.bf16.msra.mxu0 0
        %558 = vmatpush.bf16.msra.mxu0 0
        %559 = vmatpush.bf16.msra.mxu0 %v524
        %560 = vmatmul.bf16.gmra.mxu0 %v515
        %v561 = vpop.f32.mrf.mxu0
        %v562 = vadd.f32 0.0, %v561
        %v563 = vpop.f32.mrf.mxu0
        %564 = vdwg.mxu0
        %v565 = vadd.f32 %v487, %v536
        %v566 = vadd.f32 %v488, %v549
        %v567 = vadd.f32 %v489, %v562
        %v568 = vld [vmem:[%s179] sm:$0x3f]
        %v569 = vld [vmem:[%s1] sm:$0xf]
        %v571 = vunpack.c.l.b16 %v569
        %v572 = vpack.c.b16 %v571, %v571
        %573 = vrot.lane.b32.xlu0 %v572, 108
        %v574 = vpop.permute.xlu0 %573
        %576 = vst [vmem:[#allocation1] ss:$4 sm:$0xff] %v568
        %v577 = vld.sshfl [vmem:[#allocation1] sm:$0xff pattern:$0x73625140]
        %v579 = vld.sshfl [vmem:[#allocation1 + $0x8] sm:$0xff pattern:$0x73625140]
        %v581 = vld.sshfl [vmem:[#allocation1 + $0x10] sm:$0xff pattern:$0x73625140]
        %583 = vrot.lane.b32.xlu0 %v577, 108
        %v584 = vpop.permute.xlu0 %583
        %585 = vrot.lane.b32.xlu0 %v579, 108
        %v586 = vpop.permute.xlu0 %585
        %587 = vrot.lane.b32.xlu0 %v581, 108
        %v588 = vpop.permute.xlu0 %587
        %vm589 = vcmask 883712
        %v590 = vsel %vm589, %v584, %v586
        %v591 = vsel %vm589, %v586, %v588
        %v593 = vsel %vm229, %v574, 0
        %v596 = vsel %vm233, %v590, 0
        %v599 = vsel %vm233, %v591, 0
        %v602 = vsel %vm233, %v588, 0
        %604 = vmatpush.bf16.msra.mxu0 0
        %605 = vmatpush.bf16.msra.mxu0 0
        %606 = vmatpush.bf16.msra.mxu0 0
        %607 = vmatpush.bf16.msra.mxu0 0
        %608 = vmatpush.bf16.msra.mxu0 0
        %609 = vmatpush.bf16.msra.mxu0 0
        %610 = vmatpush.bf16.msra.mxu0 0
        %611 = vmatpush.bf16.msra.mxu0 %v596
        %612 = vmatmul.bf16.gmra.mxu0 %v593
        %v613 = vpop.f32.mrf.mxu0
        %v614 = vadd.f32 0.0, %v613
        %v615 = vpop.f32.mrf.mxu0
        %616 = vdwg.mxu0
        %617 = vmatpush.bf16.msra.mxu0 0
        %618 = vmatpush.bf16.msra.mxu0 0
        %619 = vmatpush.bf16.msra.mxu0 0
        %620 = vmatpush.bf16.msra.mxu0 0
        %621 = vmatpush.bf16.msra.mxu0 0
        %622 = vmatpush.bf16.msra.mxu0 0
        %623 = vmatpush.bf16.msra.mxu0 0
        %624 = vmatpush.bf16.msra.mxu0 %v599
        %625 = vmatmul.bf16.gmra.mxu0 %v593
        %v626 = vpop.f32.mrf.mxu0
        %v627 = vadd.f32 0.0, %v626
        %v628 = vpop.f32.mrf.mxu0
        %629 = vdwg.mxu0
        %630 = vmatpush.bf16.msra.mxu0 0
        %631 = vmatpush.bf16.msra.mxu0 0
        %632 = vmatpush.bf16.msra.mxu0 0
        %633 = vmatpush.bf16.msra.mxu0 0
        %634 = vmatpush.bf16.msra.mxu0 0
        %635 = vmatpush.bf16.msra.mxu0 0
        %636 = vmatpush.bf16.msra.mxu0 0
        %637 = vmatpush.bf16.msra.mxu0 %v602
        %638 = vmatmul.bf16.gmra.mxu0 %v593
        %v639 = vpop.f32.mrf.mxu0
        %v640 = vadd.f32 0.0, %v639
        %v641 = vpop.f32.mrf.mxu0
        %642 = vdwg.mxu0
        %v643 = vadd.f32 %v565, %v614
        %v644 = vadd.f32 %v566, %v627
        %v645 = vadd.f32 %v567, %v640
        %v646 = vld [vmem:[%s179] sm:$0x3f]
        %v647 = vld [vmem:[%s1] sm:$0xf]
        %v649 = vunpack.c.l.b16 %v647
        %v650 = vpack.c.b16 %v649, %v649
        %651 = vrot.lane.b32.xlu0 %v650, 104
        %v652 = vpop.permute.xlu0 %651
        %654 = vst [vmem:[#allocation1] ss:$4 sm:$0xff] %v646
        %v655 = vld.sshfl [vmem:[#allocation1] sm:$0xff pattern:$0x73625140]
        %v657 = vld.sshfl [vmem:[#allocation1 + $0x8] sm:$0xff pattern:$0x73625140]
        %v659 = vld.sshfl [vmem:[#allocation1 + $0x10] sm:$0xff pattern:$0x73625140]
        %661 = vrot.lane.b32.xlu0 %v655, 92
        %v662 = vpop.permute.xlu0 %661
        %663 = vrot.lane.b32.xlu0 %v657, 92
        %v664 = vpop.permute.xlu0 %663
        %665 = vrot.lane.b32.xlu0 %v659, 92
        %v666 = vpop.permute.xlu0 %665
        %vm667 = vcmask 752640
        %v668 = vsel %vm667, %v662, %v664
        %v669 = vsel %vm667, %v664, %v666
        %v671 = vsel %vm229, %v652, 0
        %v674 = vsel %vm233, %v668, 0
        %v677 = vsel %vm233, %v669, 0
        %v680 = vsel %vm233, %v666, 0
        %682 = vmatpush.bf16.msra.mxu0 0
        %683 = vmatpush.bf16.msra.mxu0 0
        %684 = vmatpush.bf16.msra.mxu0 0
        %685 = vmatpush.bf16.msra.mxu0 0
        %686 = vmatpush.bf16.msra.mxu0 0
        %687 = vmatpush.bf16.msra.mxu0 0
        %688 = vmatpush.bf16.msra.mxu0 0
        %689 = vmatpush.bf16.msra.mxu0 %v674
        %690 = vmatmul.bf16.gmra.mxu0 %v671
        %v691 = vpop.f32.mrf.mxu0
        %v692 = vadd.f32 0.0, %v691
        %v693 = vpop.f32.mrf.mxu0
        %694 = vdwg.mxu0
        %695 = vmatpush.bf16.msra.mxu0 0
        %696 = vmatpush.bf16.msra.mxu0 0
        %697 = vmatpush.bf16.msra.mxu0 0
        %698 = vmatpush.bf16.msra.mxu0 0
        %699 = vmatpush.bf16.msra.mxu0 0
        %700 = vmatpush.bf16.msra.mxu0 0
        %701 = vmatpush.bf16.msra.mxu0 0
        %702 = vmatpush.bf16.msra.mxu0 %v677
        %703 = vmatmul.bf16.gmra.mxu0 %v671
        %v704 = vpop.f32.mrf.mxu0
        %v705 = vadd.f32 0.0, %v704
        %v706 = vpop.f32.mrf.mxu0
        %707 = vdwg.mxu0
        %708 = vmatpush.bf16.msra.mxu0 0
        %709 = vmatpush.bf16.msra.mxu0 0
        %710 = vmatpush.bf16.msra.mxu0 0
        %711 = vmatpush.bf16.msra.mxu0 0
        %712 = vmatpush.bf16.msra.mxu0 0
        %713 = vmatpush.bf16.msra.mxu0 0
        %714 = vmatpush.bf16.msra.mxu0 0
        %715 = vmatpush.bf16.msra.mxu0 %v680
        %716 = vmatmul.bf16.gmra.mxu0 %v671
        %v717 = vpop.f32.mrf.mxu0
        %v718 = vadd.f32 0.0, %v717
        %v719 = vpop.f32.mrf.mxu0
        %720 = vdwg.mxu0
        %v721 = vadd.f32 %v643, %v692
        %v722 = vadd.f32 %v644, %v705
        %v723 = vadd.f32 %v645, %v718
        %v724 = vld [vmem:[%s179] sm:$0x3f]
        %v725 = vld [vmem:[%s1] sm:$0xf]
        %v727 = vunpack.c.l.b16 %v725
        %v728 = vpack.c.b16 %v727, %v727
        %729 = vrot.lane.b32.xlu0 %v728, 100
        %v730 = vpop.permute.xlu0 %729
        %732 = vst [vmem:[#allocation1] ss:$4 sm:$0xff] %v724
        %v733 = vld.sshfl [vmem:[#allocation1] sm:$0xff pattern:$0x73625140]
        %v735 = vld.sshfl [vmem:[#allocation1 + $0x8] sm:$0xff pattern:$0x73625140]
        %v737 = vld.sshfl [vmem:[#allocation1 + $0x10] sm:$0xff pattern:$0x73625140]
        %739 = vrot.lane.b32.xlu0 %v733, 91
        %v740 = vpop.permute.xlu0 %739
        %741 = vrot.lane.b32.xlu0 %v735, 91
        %v742 = vpop.permute.xlu0 %741
        %743 = vrot.lane.b32.xlu0 %v737, 91
        %v744 = vpop.permute.xlu0 %743
        %vm745 = vcmask 744448
        %v746 = vsel %vm745, %v740, %v742
        %v747 = vsel %vm745, %v742, %v744
        %v749 = vsel %vm229, %v730, 0
        %v752 = vsel %vm233, %v746, 0
        %v755 = vsel %vm233, %v747, 0
        %v758 = vsel %vm233, %v744, 0
        %760 = vmatpush.bf16.msra.mxu0 0
        %761 = vmatpush.bf16.msra.mxu0 0
        %762 = vmatpush.bf16.msra.mxu0 0
        %763 = vmatpush.bf16.msra.mxu0 0
        %764 = vmatpush.bf16.msra.mxu0 0
        %765 = vmatpush.bf16.msra.mxu0 0
        %766 = vmatpush.bf16.msra.mxu0 0
        %767 = vmatpush.bf16.msra.mxu0 %v752
        %768 = vmatmul.bf16.gmra.mxu0 %v749
        %v769 = vpop.f32.mrf.mxu0
        %v770 = vadd.f32 0.0, %v769
        %v771 = vpop.f32.mrf.mxu0
        %772 = vdwg.mxu0
        %773 = vmatpush.bf16.msra.mxu0 0
        %774 = vmatpush.bf16.msra.mxu0 0
        %775 = vmatpush.bf16.msra.mxu0 0
        %776 = vmatpush.bf16.msra.mxu0 0
        %777 = vmatpush.bf16.msra.mxu0 0
        %778 = vmatpush.bf16.msra.mxu0 0
        %779 = vmatpush.bf16.msra.mxu0 0
        %780 = vmatpush.bf16.msra.mxu0 %v755
        %781 = vmatmul.bf16.gmra.mxu0 %v749
        %v782 = vpop.f32.mrf.mxu0
        %v783 = vadd.f32 0.0, %v782
        %v784 = vpop.f32.mrf.mxu0
        %785 = vdwg.mxu0
        %786 = vmatpush.bf16.msra.mxu0 0
        %787 = vmatpush.bf16.msra.mxu0 0
        %788 = vmatpush.bf16.msra.mxu0 0
        %789 = vmatpush.bf16.msra.mxu0 0
        %790 = vmatpush.bf16.msra.mxu0 0
        %791 = vmatpush.bf16.msra.mxu0 0
        %792 = vmatpush.bf16.msra.mxu0 0
        %793 = vmatpush.bf16.msra.mxu0 %v758
        %794 = vmatmul.bf16.gmra.mxu0 %v749
        %v795 = vpop.f32.mrf.mxu0
        %v796 = vadd.f32 0.0, %v795
        %v797 = vpop.f32.mrf.mxu0
        %798 = vdwg.mxu0
        %v799 = vadd.f32 %v721, %v770
        %v800 = vadd.f32 %v722, %v783
        %v801 = vadd.f32 %v723, %v796
        %v802 = vld [vmem:[%s179] sm:$0x3f]
        %v803 = vld [vmem:[%s1] sm:$0xf]
        %v805 = vunpack.c.l.b16 %v803
        %v806 = vpack.c.b16 %v805, %v805
        %807 = vrot.lane.b32.xlu0 %v806, 96
        %v808 = vpop.permute.xlu0 %807
        %810 = vst [vmem:[#allocation1] ss:$4 sm:$0xff] %v802
        %v811 = vld.sshfl [vmem:[#allocation1] sm:$0xff pattern:$0x73625140]
        %v813 = vld.sshfl [vmem:[#allocation1 + $0x8] sm:$0xff pattern:$0x73625140]
        %v815 = vld.sshfl [vmem:[#allocation1 + $0x10] sm:$0xff pattern:$0x73625140]
        %817 = vrot.lane.b32.xlu0 %v811, 90
        %v818 = vpop.permute.xlu0 %817
        %819 = vrot.lane.b32.xlu0 %v813, 90
        %v820 = vpop.permute.xlu0 %819
        %821 = vrot.lane.b32.xlu0 %v815, 90
        %v822 = vpop.permute.xlu0 %821
        %vm823 = vcmask 736256
        %v824 = vsel %vm823, %v818, %v820
        %v825 = vsel %vm823, %v820, %v822
        %v827 = vsel %vm229, %v808, 0
        %v830 = vsel %vm233, %v824, 0
        %v833 = vsel %vm233, %v825, 0
        %v836 = vsel %vm233, %v822, 0
        %838 = vmatpush.bf16.msra.mxu0 0
        %839 = vmatpush.bf16.msra.mxu0 0
        %840 = vmatpush.bf16.msra.mxu0 0
        %841 = vmatpush.bf16.msra.mxu0 0
        %842 = vmatpush.bf16.msra.mxu0 0
        %843 = vmatpush.bf16.msra.mxu0 0
        %844 = vmatpush.bf16.msra.mxu0 0
        %845 = vmatpush.bf16.msra.mxu0 %v830
        %846 = vmatmul.bf16.gmra.mxu0 %v827
        %v847 = vpop.f32.mrf.mxu0
        %v848 = vadd.f32 0.0, %v847
        %v849 = vpop.f32.mrf.mxu0
        %850 = vdwg.mxu0
        %851 = vmatpush.bf16.msra.mxu0 0
        %852 = vmatpush.bf16.msra.mxu0 0
        %853 = vmatpush.bf16.msra.mxu0 0
        %854 = vmatpush.bf16.msra.mxu0 0
        %855 = vmatpush.bf16.msra.mxu0 0
        %856 = vmatpush.bf16.msra.mxu0 0
        %857 = vmatpush.bf16.msra.mxu0 0
        %858 = vmatpush.bf16.msra.mxu0 %v833
        %859 = vmatmul.bf16.gmra.mxu0 %v827
        %v860 = vpop.f32.mrf.mxu0
        %v861 = vadd.f32 0.0, %v860
        %v862 = vpop.f32.mrf.mxu0
        %863 = vdwg.mxu0
        %864 = vmatpush.bf16.msra.mxu0 0
        %865 = vmatpush.bf16.msra.mxu0 0
        %866 = vmatpush.bf16.msra.mxu0 0
        %867 = vmatpush.bf16.msra.mxu0 0
        %868 = vmatpush.bf16.msra.mxu0 0
        %869 = vmatpush.bf16.msra.mxu0 0
        %870 = vmatpush.bf16.msra.mxu0 0
        %871 = vmatpush.bf16.msra.mxu0 %v836
        %872 = vmatmul.bf16.gmra.mxu0 %v827
        %v873 = vpop.f32.mrf.mxu0
        %v874 = vadd.f32 0.0, %v873
        %v875 = vpop.f32.mrf.mxu0
        %876 = vdwg.mxu0
        %v877 = vadd.f32 %v799, %v848
        %v878 = vadd.f32 %v800, %v861
        %v879 = vadd.f32 %v801, %v874
        %v880 = vld [vmem:[%s2] sm:$0xff]
        %882 = vset.pattern.permute.xlu0 0
        %883 = vperm.xlu0 %882, %v880
        %v884 = vpop.permute.xlu0 %883
        %v886 = vadd.f32 %v877, %v884
        %v887 = vadd.f32 %v878, %v884
        %v888 = vadd.f32 %v879, %v884
        %v889 = vmax.f32 %v886, 0.0
        %v890 = vmax.f32 %v887, 0.0
        %v891 = vmax.f32 %v888, 0.0
        %892 = vst [vmem:[%s202] sm:$0xff] %v889
        %893 = vst [vmem:[%s202 + $0x8] sm:$0xff] %v890
        %vm894 = vcmask 261120
        %895 = vst.msk [vmem:[%s202 + $0x10] sm:$0xff] %vm894, %v891
        %s896 = sand.u32 %s110, 1
        %s897 = scalar_lea.sflag [#allocation4], %s896
        %s898 = sand.u32 %s110, 1
        %s899 = smul.addr %s898, 24
        %s900 = scalar_lea.vmem [#allocation5], %s899
        // Predicated region
        $region37: #{tpu_custom_call.1} parent=31 // pred_check
          %p901 = pneg %p120
        $region38: #{tpu_custom_call.1} parent=31 // pred_check_branch
          %903 = sbr.rel (%p901) target = $region40
        $region39: #{tpu_custom_call.1} parent=31 // pred_region
          %s904 = smul.u32 3, %s25
          %906 = vsyncadd %s897, 0
          %s907 = smul.addr %s24, 3
          %s908 = sadd.s32 %s904, %s907
          %s909 = smul.addr %s908, 8
          %s910 = scalar_lea.hbm %s3, %s909
          %s912 = sshll.u32 %s900, 4
          %s913 = int_to_ptr.vmem [resolvable:$true] %s912
          %s914 = sshll.u32 %s910, 4
          %s915 = int_to_ptr.hbm [resolvable:$true] %s914
          %917 = dma.vmem_to_hbm [thread:$0]  %s913, 384, %s915, %s897
        $region40: #{tpu_custom_call.1} parent=31 // pred_fallthru
          _
      $region32: #{tpu_custom_call.1} parent=5 // pred_fallthru
        _
      %p918 = scmp.le.s32.totalorder 2, %s15
      // Predicated region
      $region41: #{tpu_custom_call.1} parent=5 // pred_check
        %p919 = pneg %p918
      $region42: #{tpu_custom_call.1} parent=5 // pred_check_branch
        %921 = sbr.rel (%p919) target = $region44
      $region43: #{tpu_custom_call.1} parent=5 // pred_region
        %s922 = ssub.s32 %s15, 2
        // Predicated region
        $region45: #{tpu_custom_call.1} parent=43 // pred_check
          %p923 = pneg %p126
        $region46: #{tpu_custom_call.1} parent=43 // pred_check_branch
          %925 = sbr.rel (%p923) target = $region48
        $region47: #{tpu_custom_call.1} parent=43 // pred_region
          %s926 = sand.u32 %s111, 1
          %s927 = scalar_lea.sflag [#allocation4], %s926
          %s928 = sand.u32 %s111, 1
          %s929 = smul.addr %s928, 24
          %s930 = scalar_lea.vmem [#allocation5], %s929
          %932 = dma.done %s927, 384
        $region48: #{tpu_custom_call.1} parent=43 // pred_fallthru
          _
      $region44: #{tpu_custom_call.1} parent=5 // pred_fallthru
        _
    $region6: #{tpu_custom_call.1} parent=1 // loop_footer
      %s19 = sadd.s32 1, %s15
    $region7: #{tpu_custom_call.1} parent=1 // loop_footer_branch
      %14 = sbr.rel target = $region3
    $region8: #{tpu_custom_call.1} parent=1 // loop_exit
      _
    %933 = vsyncpa [#allocation3], 1
    %s934 = scalar_lea.sflag [#allocation3], 1
    %935 = vsyncpa %s934, 1
    %936 = vsyncpa [#allocation4], 1
    %s937 = scalar_lea.sflag [#allocation4], 1
    %938 = vsyncpa %s937, 1

</llo_original>
